<compile_context>
chip_gen: v7x
topology: tpu7x:2x2x1
jax: 0.10.0
libtpu: 0.0.40
codegen_flags: <defaults>
</compile_context>

<pallas_src>
import functools
import math

import jax
import jax.numpy as jnp
import numpy as np
from jax import lax
from jax.experimental import pallas as pl
from jax.experimental.pallas import tpu as pltpu

LANES = 128           # vreg lane width
SUBLANES = 8          # vreg sublane count
MAX_TILE_ROWS = 8192  # (8192,128) f32 tile = 4 MiB / input / pipeline buffer
STRIP_ROWS = 32       # rows per inner strip (keeps temps vreg-resident)


def _vfl_kernel(pred_ref, target_ref, label_ref, out_ref, *,
                alpha, gamma, tile_rows, strip, tiles_per_shard,
                n_valid_rows, needs_mask):
    c = pl.program_id(0)          # shard axis ("parallel")
    j = pl.program_id(1)          # reduction axis ("arbitrary"); output resident

    @pl.when(j == 0)
    def _():
        out_ref[...] = jnp.zeros_like(out_ref)

    tile_idx = c * tiles_per_shard + j
    row_base = tile_idx * tile_rows
    n_strips = tile_rows // strip

    def _p_pow(p, log_p):
        # p**gamma specialized: integer gamma -> pure VPU multiplies (gamma=2 ->
        # p*p).  Non-integer gamma reuses the already-clamped log (one EUP exp);
        # this deviates from p**gamma only for p < e^-100 (negligible).
        g_int = int(gamma)
        if gamma == float(g_int) and 0 <= g_int <= 8:
            if g_int == 0:
                return jnp.ones_like(p)
            out = p
            for _ in range(g_int - 1):
                out = out * p
            return out
        return jnp.exp(gamma * log_p)

    def _accumulate(masked):
        # Strip-wise walk over the tile: (strip,128) f32 temps stay in vregs and
        # fold into an (8,128) carry with VPU adds only.
        def body(s, acc):
            r0 = pl.multiple_of(s * strip, SUBLANES)
            rows = pl.ds(r0, strip)
            p = pred_ref[rows, :].astype(jnp.float32)
            t = target_ref[rows, :].astype(jnp.float32)
            lbl = label_ref[rows, :].astype(jnp.float32)

            # PyTorch F.binary_cross_entropy clamps the log terms at -100.
            log_p = jnp.maximum(jnp.log(p), -100.0)
            log_1mp = jnp.maximum(jnp.log(1.0 - p), -100.0)

            ap = alpha * _p_pow(p, log_p)
            weight = ap + lbl * (t - ap)            # == alpha*p^g*(1-lbl) + t*lbl
            # pos == -(ce * weight); the sign flip happens once in the wrapper.
            pos = weight * (log_1mp + t * (log_p - log_1mp))

            if masked:
                # Rows beyond the valid extent (ragged last tile / redundant
                # clamped shard tiles) may hold garbage (possibly NaN) -> discard
                # with a SELECT.  Do NOT replace with multiply-by-mask: NaN*0
                # would poison the sum.
                g_row = row_base + r0 + lax.broadcasted_iota(
                    jnp.int32, (strip, 1), 0)
                pos = jnp.where(g_row < n_valid_rows, pos, 0.0)

            return acc + jnp.sum(
                pos.reshape(strip // SUBLANES, SUBLANES, LANES), axis=0)

        part = lax.fori_loop(0, n_strips, body,
                             jnp.zeros((SUBLANES, LANES), jnp.float32))
        out_ref[...] += part[None, :, :]

    if needs_mask:
        tile_full = row_base + tile_rows <= n_valid_rows
        @pl.when(tile_full)
        def _():
            _accumulate(False)

        @pl.when(jnp.logical_not(tile_full))
        def _():
            _accumulate(True)
    else:
        _accumulate(False)


def _pointwise_loss_sum(pred, target, label, alpha, gamma):
    """Pure-JAX reference / tail-path / backward helper (matches PyTorch)."""
    p = pred.astype(jnp.float32)
    t = target.astype(jnp.float32)
    lbl = label.astype(jnp.float32)
    weight = alpha * p ** gamma * (1.0 - lbl) + t * lbl
    ce = -(t * jnp.maximum(jnp.log(p), -100.0)
           + (1.0 - t) * jnp.maximum(jnp.log(1.0 - p), -100.0))
    return jnp.sum(ce * weight)


def _forward(pred, target, label, alpha, gamma, max_tile_rows):
    assert pred.shape == target.shape == label.shape
    n = int(math.prod(pred.shape))
    if n == 0:
        return jnp.zeros((), jnp.float32)

    n_tail = n % LANES
    n_rows = (n - n_tail) // LANES

    pf, tf, lf = jnp.ravel(pred), jnp.ravel(target), jnp.ravel(label)

    tail = None
    if n_tail:
        # <128-element lane tail: computed in plain JAX instead of padding (and
        # copying) the whole array before the kernel.
        tail = _pointwise_loss_sum(pf[n - n_tail:], tf[n - n_tail:],
                                   lf[n - n_tail:], alpha, gamma)

    if n_rows == 0:
        # TODO(synk): inputs smaller than one 128-lane row skip the kernel.
        return tail

    # --- row / tile geometry (static) ------------------------------------
    pad_rows = SUBLANES - n_rows if n_rows < SUBLANES else 0
    n_rows_k = n_rows + pad_rows          # rows seen by the kernel

    cap = max(SUBLANES, min(int(max_tile_rows), n_rows_k))
    if cap >= STRIP_ROWS:
        tile_rows = (cap // STRIP_ROWS) * STRIP_ROWS
        strip = STRIP_ROWS
    else:
        tile_rows = (cap // SUBLANES) * SUBLANES
        strip = tile_rows

    total_tiles = -(-n_rows_k // tile_rows)
    num_shards = 2 if total_tiles >= 2 else 1     # no wasted step for tiny inputs
    tiles_per_shard = -(-total_tiles // num_shards)
    needs_mask = (num_shards * tiles_per_shard * tile_rows) != n_rows_k

    def _prep(x):
        if n_tail:
            x = x[: n - n_tail]                   # aligned prefix (tail added above)
        x = x.reshape(n_rows, LANES)              # zero-copy when lane-aligned
        if pad_rows:
            # Tiny (<8 rows) neutral zero pad: weight == 0 and ce == 0 there.
            x = jnp.pad(x, ((0, pad_rows), (0, 0)))
        return x

    p2, t2, l2 = _prep(pf), _prep(tf), _prep(lf)

    kernel = functools.partial(
        _vfl_kernel, alpha=float(alpha), gamma=float(gamma),
        tile_rows=tile_rows, strip=strip, tiles_per_shard=tiles_per_shard,
        n_valid_rows=n_rows_k, needs_mask=needs_mask)

    def in_map(c, j):
        # Clamp so redundant shard tiles re-read an in-bounds block; their
        # contribution is select-masked to zero in-kernel.
        return (jnp.minimum(c * tiles_per_shard + j, total_tiles - 1), 0)

    tile_spec = pl.BlockSpec((tile_rows, LANES), in_map)
    partials = pl.pallas_call(
        kernel,
        out_shape=jax.ShapeDtypeStruct((num_shards, SUBLANES, LANES), jnp.float32),
        grid_spec=pltpu.PrefetchScalarGridSpec(
            num_scalar_prefetch=0,
            grid=(num_shards, tiles_per_shard),
            in_specs=[tile_spec, tile_spec, tile_spec],
            out_specs=pl.BlockSpec((1, SUBLANES, LANES), lambda c, j: (c, 0, 0)),
        ),
        compiler_params=pltpu.CompilerParams(
            dimension_semantics=("parallel", "arbitrary"),
            vmem_limit_bytes=40 * 1024 * 1024,
        ),
    )(p2, t2, l2)

    # Kernel accumulated -(ce * weight); flip the sign once here and fold the
    # (num_shards, 8, 128) partials with a single cheap XLA reduce.
    loss = -jnp.sum(partials)
    if tail is not None:
        loss = loss + tail
    return loss


@functools.lru_cache(maxsize=None)
def _build_vfl(alpha, gamma, max_tile_rows):
    @jax.custom_vjp
    def vfl(pred, target, label):
        return _forward(pred, target, label, alpha, gamma, max_tile_rows)

    def vfl_fwd(pred, target, label):
        return (_forward(pred, target, label, alpha, gamma, max_tile_rows),
                (pred, target, label))

    def vfl_bwd(res, g):
        # Backward falls back to the pure-JAX reference (loss bwd is cheap and
        # memory-bound; this keeps jax.grad working through the Pallas forward).
        pred, target, label = res
        _, pullback = jax.vjp(
            lambda p, t, l: _pointwise_loss_sum(p, t, l, alpha, gamma),
            pred, target, label)
        return pullback(g)

    vfl.defvjp(vfl_fwd, vfl_bwd)
    return vfl


def varifocal_loss(pred_score, target_score, label,
                   alpha: float = 0.75, gamma: float = 2.0,
                   *, max_tile_rows: int = MAX_TILE_ROWS):
    """Scalar varifocal loss; inputs may have any (identical) shape/dtype."""
    return _build_vfl(float(alpha), float(gamma), int(max_tile_rows))(
        pred_score, target_score, label)


if __name__ == "__main__":
    key = jax.random.PRNGKey(0)
    ks = jax.random.split(key, 12)

    def make(shape, kp, kt, kl, dtype=jnp.float32):
        pred = jax.nn.sigmoid(jax.random.normal(kp, shape, jnp.float32)).astype(dtype)
        target = jax.random.uniform(kt, shape, jnp.float32).astype(dtype)
        label = (jax.random.uniform(kl, shape) > 0.8).astype(dtype)
        return pred, target, label

    # A) lane-aligned detection-head-like shape (zero-copy single-tile path).
    pA, tA, lA = make((2, 64, 8), ks[0], ks[1], ks[2])
    lossA = jax.block_until_ready(varifocal_loss(pA, tA, lA))
    refA = _pointwise_loss_sum(pA, tA, lA, 0.75, 2.0)
    np.testing.assert_allclose(np.asarray(lossA), np.asarray(refA),
                               rtol=5e-5, atol=1e-5)

    # B) ragged numel: <128-element lane tail handled in plain JAX (no pad copy).
    pB, tB, lB = make((3, 50, 7), ks[3], ks[4], ks[5])
    lossB = jax.block_until_ready(varifocal_loss(pB, tB, lB))
    refB = _pointwise_loss_sum(pB, tB, lB, 0.75, 2.0)
    np.testing.assert_allclose(np.asarray(lossB), np.asarray(refB),
                               rtol=5e-5, atol=1e-5)

    # C) multi-tile / two-shard / ragged-last-tile / redundant-clamped-tile path
    #    (small max_tile_rows override so the full pipeline logic runs at test size).
    pC, tC, lC = make((2, 366, 7), ks[6], ks[7], ks[8])
    lossC = jax.block_until_ready(varifocal_loss(pC, tC, lC, max_tile_rows=16))
    refC = _pointwise_loss_sum(pC, tC, lC, 0.75, 2.0)
    np.testing.assert_allclose(np.asarray(lossC), np.asarray(refC),
                               rtol=5e-5, atol=1e-4)

    # D) bf16 inputs streamed in native dtype, compute in f32.
    pD, tD, lD = make((2, 64, 8), ks[9], ks[10], ks[11], dtype=jnp.bfloat16)
    lossD = jax.block_until_ready(varifocal_loss(pD, tD, lD))
    refD = _pointwise_loss_sum(pD, tD, lD, 0.75, 2.0)
    np.testing.assert_allclose(np.asarray(lossD), np.asarray(refD),
                               rtol=5e-5, atol=1e-5)

    # Gradient smoke test through the custom_vjp (pure-JAX backward).
    grad_p = jax.grad(lambda p: varifocal_loss(p, tA, lA))(pA)
    jax.block_until_ready(grad_p)

    print("KERNEL_OK")
</pallas_src>

<mosaic_0001>
module attributes {stable_mosaic.version = 11 : i64} {
  func.func @_vfl_kernel(%arg0: i32, %arg1: i32, %arg2: memref<8x128xf32, #tpu.memory_space<vmem>>, %arg3: memref<8x128xf32, #tpu.memory_space<vmem>>, %arg4: memref<8x128xf32, #tpu.memory_space<vmem>>, %arg5: memref<1x8x128xf32, #tpu.memory_space<vmem>>) attributes {dimension_semantics = [#tpu.dimension_semantics<parallel>, #tpu.dimension_semantics<arbitrary>], iteration_bounds = array<i64: 1, 1>, scalar_prefetch = 0 : i64, scratch_operands = 0 : i64, tpu.core_type = #tpu.core_type<tc>, window_params = [{transform_indices = @transform_0, window_bounds = array<i64: 8, 128>}, {transform_indices = @transform_1, window_bounds = array<i64: 8, 128>}, {transform_indices = @transform_2, window_bounds = array<i64: 8, 128>}, {transform_indices = @transform_3, window_bounds = array<i64: 1, 8, 128>}]} {
    %c0_i32 = arith.constant 0 : i32
    %0 = arith.cmpi eq, %arg1, %c0_i32 : i32
    %1 = arith.extui %0 : i1 to i32
    %c0_i32_0 = arith.constant 0 : i32
    %2 = arith.cmpi ne, %1, %c0_i32_0 : i32
    scf.if %2 {
      %cst_15 = arith.constant 0.000000e+00 : f32
      %37 = vector.broadcast %cst_15 : f32 to vector<1x8x128xf32>
      %c0_16 = arith.constant 0 : index
      %c0_17 = arith.constant 0 : index
      %c0_18 = arith.constant 0 : index
      %38 = vector.load %arg5[%c0_16, %c0_17, %c0_18] : memref<1x8x128xf32, #tpu.memory_space<vmem>>, vector<1x8x128xf32>
      tpu.vector_store %arg5[%c0_16, %c0_17, %c0_18], %37 {strides = array<i32>} : memref<1x8x128xf32, #tpu.memory_space<vmem>>, vector<1x8x128xf32>,
    } else {
    }
    %cst = arith.constant 0.000000e+00 : f32
    %3 = vector.broadcast %cst : f32 to vector<8x128xf32>
    %c0_i32_1 = arith.constant 0 : i32
    %c8_i32 = arith.constant 8 : i32
    %4 = arith.muli %c0_i32_1, %c8_i32 : i32
    %5 = tpu.assume_multiple %4, 8 : i32
    %6 = arith.index_cast %5 : i32 to index
    %c0 = arith.constant 0 : index
    %7 = vector.load %arg2[%6, %c0] : memref<8x128xf32, #tpu.memory_space<vmem>>, vector<8x128xf32>
    %8 = arith.index_cast %5 : i32 to index
    %c0_2 = arith.constant 0 : index
    %9 = vector.load %arg3[%8, %c0_2] : memref<8x128xf32, #tpu.memory_space<vmem>>, vector<8x128xf32>
    %10 = arith.index_cast %5 : i32 to index
    %c0_3 = arith.constant 0 : index
    %11 = vector.load %arg4[%10, %c0_3] : memref<8x128xf32, #tpu.memory_space<vmem>>, vector<8x128xf32>
    %12 = math.log %7 : vector<8x128xf32>
    %cst_4 = arith.constant -1.000000e+02 : f32
    %13 = vector.broadcast %cst_4 : f32 to vector<8x128xf32>
    %14 = arith.maximumf %12, %13 : vector<8x128xf32>
    %cst_5 = arith.constant 1.000000e+00 : f32
    %15 = vector.broadcast %cst_5 : f32 to vector<8x128xf32>
    %16 = arith.subf %15, %7 : vector<8x128xf32>
    %17 = math.log %16 : vector<8x128xf32>
    %cst_6 = arith.constant -1.000000e+02 : f32
    %18 = vector.broadcast %cst_6 : f32 to vector<8x128xf32>
    %19 = arith.maximumf %17, %18 : vector<8x128xf32>
    %20 = arith.mulf %7, %7 : vector<8x128xf32>
    %cst_7 = arith.constant 7.500000e-01 : f32
    %21 = vector.broadcast %cst_7 : f32 to vector<8x128xf32>
    %22 = arith.mulf %21, %20 : vector<8x128xf32>
    %23 = arith.subf %9, %22 : vector<8x128xf32>
    %24 = arith.mulf %11, %23 : vector<8x128xf32>
    %25 = arith.addf %22, %24 : vector<8x128xf32>
    %26 = arith.subf %14, %19 : vector<8x128xf32>
    %27 = arith.mulf %9, %26 : vector<8x128xf32>
    %28 = arith.addf %19, %27 : vector<8x128xf32>
    %29 = arith.mulf %25, %28 : vector<8x128xf32>
    %30 = vector.shape_cast %29 : vector<8x128xf32> to vector<1x8x128xf32>
    %cst_8 = arith.constant dense<0.000000e+00> : vector<8x128xf32>
    %31 = vector.multi_reduction <add>, %30, %cst_8 [0] : vector<1x8x128xf32> to vector<8x128xf32>
    %32 = arith.addf %3, %31 : vector<8x128xf32>
    %c1_i32 = arith.constant 1 : i32
    %c0_9 = arith.constant 0 : index
    %c0_10 = arith.constant 0 : index
    %c0_11 = arith.constant 0 : index
    %33 = vector.load %arg5[%c0_9, %c0_10, %c0_11] : memref<1x8x128xf32, #tpu.memory_space<vmem>>, vector<1x8x128xf32>
    %34 = vector.shape_cast %32 : vector<8x128xf32> to vector<1x8x128xf32>
    %35 = arith.addf %33, %34 : vector<1x8x128xf32>
    %c0_12 = arith.constant 0 : index
    %c0_13 = arith.constant 0 : index
    %c0_14 = arith.constant 0 : index
    %36 = vector.load %arg5[%c0_12, %c0_13, %c0_14] : memref<1x8x128xf32, #tpu.memory_space<vmem>>, vector<1x8x128xf32>
    tpu.vector_store %arg5[%c0_12, %c0_13, %c0_14], %35 {strides = array<i32>} : memref<1x8x128xf32, #tpu.memory_space<vmem>>, vector<1x8x128xf32>,
    return
  }
  func.func @transform_0(%arg0: i32, %arg1: i32) -> (i32, i32) {
    %c1_i32 = arith.constant 1 : i32
    %0 = arith.muli %arg0, %c1_i32 : i32
    %1 = arith.addi %0, %arg1 : i32
    %c0_i32 = arith.constant 0 : i32
    %2 = arith.minsi %1, %c0_i32 : i32
    %c0_i32_0 = arith.constant 0 : i32
    %c0_i32_1 = arith.constant 0 : i32
    return %2, %c0_i32_0 : i32, i32
  }
  func.func @transform_1(%arg0: i32, %arg1: i32) -> (i32, i32) {
    %c1_i32 = arith.constant 1 : i32
    %0 = arith.muli %arg0, %c1_i32 : i32
    %1 = arith.addi %0, %arg1 : i32
    %c0_i32 = arith.constant 0 : i32
    %2 = arith.minsi %1, %c0_i32 : i32
    %c0_i32_0 = arith.constant 0 : i32
    %c0_i32_1 = arith.constant 0 : i32
    return %2, %c0_i32_0 : i32, i32
  }
  func.func @transform_2(%arg0: i32, %arg1: i32) -> (i32, i32) {
    %c1_i32 = arith.constant 1 : i32
    %0 = arith.muli %arg0, %c1_i32 : i32
    %1 = arith.addi %0, %arg1 : i32
    %c0_i32 = arith.constant 0 : i32
    %2 = arith.minsi %1, %c0_i32 : i32
    %c0_i32_0 = arith.constant 0 : i32
    %c0_i32_1 = arith.constant 0 : i32
    return %2, %c0_i32_0 : i32, i32
  }
  func.func @transform_3(%arg0: i32, %arg1: i32) -> (i32, i32, i32) {
    %c0_i32 = arith.constant 0 : i32
    %c0_i32_0 = arith.constant 0 : i32
    %c0_i32_1 = arith.constant 0 : i32
    return %arg0, %c0_i32, %c0_i32_0 : i32, i32, i32
  }
}

</mosaic_0001>

<llo_original>
// kernel: tpu_custom_call.1
$region0: #{tpu_custom_call.1}
  #allocation0 [shape = 'u32[]', space=smem, size = 0x4, offset = 0x4, fixed_abs, tag = 'smem constant byte address 0x4 - core index']
  #allocation1 [shape = 'u32[144,128]{1,0:T(1,128)}', space=vmem, size = 0x12000, scoped, tag = 'internal scratch']
  %s0 = inlined_call_operand.hbm [shape: f32[8,128], index: 0, kind: input, shape index: {}]
  %s1 = inlined_call_operand.hbm [shape: f32[8,128], index: 1, kind: input, shape index: {}]
  %s2 = inlined_call_operand.hbm [shape: f32[8,128], index: 2, kind: input, shape index: {}]
  %s3 = inlined_call_operand.hbm [shape: f32[1,8,128], index: 3, kind: output, shape index: {}]
  %s4 = sld [smem:[#allocation0]]
  $region38: #{tpu_custom_call.1} parent=0
    _
  %s6 = ssub.s32 1, %s4
  %s7 = scalar_select 0, %s6, %s4
  $region1: #{tpu_custom_call.1} parent=0
    #allocation2 [shape = 'u8[4096]{0}', space=vmem, size = 0x1000, scoped, tag = 'input window, operand 0, single buffered']
    #allocation3 [shape = 's32[1]{0}', space=sflag, size = 0x4, scoped, tag = 'scoped memory for tpu_custom_call.1']
    #allocation4 [shape = 's32[1]{0}', space=sflag, size = 0x4, scoped, tag = 'scoped memory for tpu_custom_call.1']
    #allocation5 [shape = 'u8[4096]{0}', space=vmem, size = 0x1000, scoped, tag = 'input window, operand 1, single buffered']
    #allocation6 [shape = 's32[1]{0}', space=sflag, size = 0x4, scoped, tag = 'scoped memory for tpu_custom_call.1']
    #allocation7 [shape = 'u8[4096]{0}', space=vmem, size = 0x1000, scoped, tag = 'input window, operand 2, single buffered']
    #allocation8 [shape = 'u8[4096]{0}', space=vmem, size = 0x1000, scoped, tag = 'output window, operand 0, single buffered']
    %8 = vsyncpa [#allocation3], 0
    %9 = vsyncpa [#allocation6], 0
    %10 = vsyncpa [#allocation4], 0
    // Predicated region
    $region2: #{tpu_custom_call.1} parent=1 // pred_check
      _
    $region3: #{tpu_custom_call.1} parent=1 // pred_check_branch
      %12 = sbr.rel (0) target = $region5
    $region4: #{tpu_custom_call.1} parent=1 // pred_region
      %s13 = sadd.s32 0, 0
      %p14 = scmp.lt.s32.totalorder %s13, 0
      %s15 = scalar_select %p14, %s13, 0
      %s17 = ssub.s32 128, 128
      %18 = vsyncadd [#allocation3], %s17
      %s19 = smul.addr %s15, 128
      %s20 = scalar_lea.hbm %s0, %s19
      %s22 = sshll.u32 [#allocation2], 4
      %s23 = int_to_ptr.vmem [resolvable:$true] %s22
      %25 = dma.hbm_to_vmem [thread:$0]  %s20, 128, %s23, [#allocation3]
    $region5: #{tpu_custom_call.1} parent=1 // pred_fallthru
      _
    // Predicated region
    $region6: #{tpu_custom_call.1} parent=1 // pred_check
      _
    $region7: #{tpu_custom_call.1} parent=1 // pred_check_branch
      %27 = sbr.rel (0) target = $region9
    $region8: #{tpu_custom_call.1} parent=1 // pred_region
      %s28 = sadd.s32 0, 0
      %p29 = scmp.lt.s32.totalorder %s28, 0
      %s30 = scalar_select %p29, %s28, 0
      %s32 = ssub.s32 128, 128
      %33 = vsyncadd [#allocation6], %s32
      %s34 = smul.addr %s30, 128
      %s35 = scalar_lea.hbm %s1, %s34
      %s37 = sshll.u32 [#allocation5], 4
      %s38 = int_to_ptr.vmem [resolvable:$true] %s37
      %40 = dma.hbm_to_vmem [thread:$0]  %s35, 128, %s38, [#allocation6]
    $region9: #{tpu_custom_call.1} parent=1 // pred_fallthru
      _
    // Predicated region
    $region10: #{tpu_custom_call.1} parent=1 // pred_check
      _
    $region11: #{tpu_custom_call.1} parent=1 // pred_check_branch
      %42 = sbr.rel (0) target = $region13
    $region12: #{tpu_custom_call.1} parent=1 // pred_region
      %s43 = sadd.s32 0, 0
      %p44 = scmp.lt.s32.totalorder %s43, 0
      %s45 = scalar_select %p44, %s43, 0
      %s47 = ssub.s32 128, 128
      %48 = vsyncadd [#allocation6], %s47
      %s49 = smul.addr %s45, 128
      %s50 = scalar_lea.hbm %s2, %s49
      %s52 = sshll.u32 [#allocation7], 4
      %s53 = int_to_ptr.vmem [resolvable:$true] %s52
      %55 = dma.hbm_to_vmem [thread:$0]  %s50, 128, %s53, [#allocation6]
    $region13: #{tpu_custom_call.1} parent=1 // pred_fallthru
      _
    // Predicated region
    $region14: #{tpu_custom_call.1} parent=1 // pred_check
      _
    $region15: #{tpu_custom_call.1} parent=1 // pred_check_branch
      %57 = sbr.rel (0) target = $region17
    $region16: #{tpu_custom_call.1} parent=1 // pred_region
      %58 = dma.done [#allocation3], 128
    $region17: #{tpu_custom_call.1} parent=1 // pred_fallthru
      _
    // Predicated region
    $region18: #{tpu_custom_call.1} parent=1 // pred_check
      _
    $region19: #{tpu_custom_call.1} parent=1 // pred_check_branch
      %60 = sbr.rel (0) target = $region21
    $region20: #{tpu_custom_call.1} parent=1 // pred_region
      %61 = dma.done [#allocation6], 128
    $region21: #{tpu_custom_call.1} parent=1 // pred_fallthru
      _
    // Predicated region
    $region22: #{tpu_custom_call.1} parent=1 // pred_check
      _
    $region23: #{tpu_custom_call.1} parent=1 // pred_check_branch
      %63 = sbr.rel (0) target = $region25
    $region24: #{tpu_custom_call.1} parent=1 // pred_region
      %64 = dma.done [#allocation6], 128
    $region25: #{tpu_custom_call.1} parent=1 // pred_fallthru
      _
    %s65 = sadd.s32 0, 0
    %p66 = scmp.lt.s32.totalorder %s65, 0
    %s67 = scalar_select %p66, %s65, 0
    %s68 = sadd.s32 0, 0
    %p69 = scmp.lt.s32.totalorder %s68, 0
    %s70 = scalar_select %p69, %s68, 0
    %s71 = sadd.s32 0, 0
    %p72 = scmp.lt.s32.totalorder %s71, 0
    %s73 = scalar_select %p72, %s71, 0
    %p74 = scmp.eq.s32.totalorder 0, 0
    // Predicated region
    $region26: #{tpu_custom_call.1} parent=1 // pred_check
      %p75 = pneg %p74
    $region27: #{tpu_custom_call.1} parent=1 // pred_check_branch
      %77 = sbr.rel (%p75) target = $region29
    $region28: #{tpu_custom_call.1} parent=1 // pred_region
      %78 = vst [vmem:[#allocation8] sm:$0xff] 0.0
    $region29: #{tpu_custom_call.1} parent=1 // pred_fallthru
      _
    %v79 = vld [vmem:[#allocation2] sm:$0xff]
    %v80 = vld [vmem:[#allocation5] sm:$0xff]
    %v81 = vld [vmem:[#allocation7] sm:$0xff]
    %v82 = vlog2.pop %v79
    %v83 = vmul.f32 %v82, 0.6931472
    %v84 = vmax.f32 %v83, -100.0
    %v85 = vsub.f32 1.0, %v79
    %v86 = vlog2.pop %v85
    %v87 = vmul.f32 %v86, 0.6931472
    %v88 = vmax.f32 %v87, -100.0
    %v89 = vmul.f32 %v79, %v79
    %v90 = vmul.f32 %v89, 0.75
    %v91 = vsub.f32 %v80, %v90
    %v92 = vmul.f32 %v81, %v91
    %v93 = vadd.f32 %v90, %v92
    %v94 = vsub.f32 %v84, %v88
    %v95 = vmul.f32 %v80, %v94
    %v96 = vadd.f32 %v88, %v95
    %v97 = vmul.f32 %v93, %v96
    %v98 = vadd.f32 %v97, 0.0
    %v99 = vadd.f32 %v98, 0.0
    %v100 = vld [vmem:[#allocation8] sm:$0xff]
    %v101 = vadd.f32 %v100, %v99
    %102 = vst [vmem:[#allocation8] sm:$0xff] %v101
    // Predicated region
    $region30: #{tpu_custom_call.1} parent=1 // pred_check
      _
    $region31: #{tpu_custom_call.1} parent=1 // pred_check_branch
      %104 = sbr.rel (0) target = $region33
    $region32: #{tpu_custom_call.1} parent=1 // pred_region
      %s106 = ssub.s32 128, 128
      %107 = vsyncadd [#allocation4], %s106
      %s109 = sshll.u32 [#allocation8], 4
      %s110 = int_to_ptr.vmem [resolvable:$true] %s109
      %112 = dma.vmem_to_hbm [thread:$0]  %s110, 128, %s3, [#allocation4]
    $region33: #{tpu_custom_call.1} parent=1 // pred_fallthru
      _
    // Predicated region
    $region34: #{tpu_custom_call.1} parent=1 // pred_check
      _
    $region35: #{tpu_custom_call.1} parent=1 // pred_check_branch
      %114 = sbr.rel (0) target = $region37
    $region36: #{tpu_custom_call.1} parent=1 // pred_region
      %115 = dma.done [#allocation4], 128
    $region37: #{tpu_custom_call.1} parent=1 // pred_fallthru
      _
    %116 = vsyncpa [#allocation3], 1
    %117 = vsyncpa [#allocation6], 1
    %118 = vsyncpa [#allocation4], 1

</llo_original>
